<compile_context>
chip_gen: v6e
topology: v6e:2x2x1
jax: 0.10.0
libtpu: 0.0.40
codegen_flags: <defaults>
</compile_context>

<pallas_src>
import jax
import jax.numpy as jnp
from jax.experimental import pallas as pl
from jax.experimental.pallas import tpu as pltpu


def _make_kernel(HW, tHW, needs_mask):
    inv_hw = 1.0 / float(HW)

    def kernel(x_ref, w1t_ref, w2t_ref, o_ref, acc_ref):
        # x_ref:   (Bt, C, tHW)  slab of spatial positions for Bt batch rows
        # w1t_ref: (C, Ch)       conv1 weight, transposed
        # w2t_ref: (Ch, C)       conv2 weight, transposed
        # o_ref:   (Bt, C)       sigmoid(2 * MLP(avg_pool(x)))
        # acc_ref: (Bt, C)       running spatial sum (VMEM scratch)
        hw_i = pl.program_id(1)

        @pl.when(hw_i == 0)
        def _():
            acc_ref[...] = jnp.zeros_like(acc_ref)

        x = x_ref[...]                                        # (Bt, C, tHW)
        if needs_mask:
            # Mask columns past the true HW so the mean is unbiased.
            col = jax.lax.broadcasted_iota(jnp.int32, x.shape, dimension=2)
            valid = (hw_i * tHW + col) < HW
            x = jnp.where(valid, x, 0.0)

        # Partial spatial sum for this tile (VPU adds + one cross-lane reduce).
        acc_ref[...] += jnp.sum(x, axis=-1)                   # (Bt, C)

        @pl.when(hw_i == pl.num_programs(1) - 1)
        def _():
            pooled = acc_ref[...] * jnp.float32(inv_hw)       # AdaptiveAvgPool2d(1)
            h = jnp.dot(pooled, w1t_ref[...],
                        preferred_element_type=jnp.float32)   # (Bt, Ch)
            h = jnp.maximum(h, 0.0)                           # ReLU
            out = jnp.dot(h, w2t_ref[...],
                          preferred_element_type=jnp.float32)  # (Bt, C)
            # maxout == avgout (max_pool of an already-(1,1) tensor), so
            # sigmoid(avgout + maxout) == sigmoid(2 * avgout) exactly.
            o_ref[...] = jax.nn.sigmoid(2.0 * out)

    return kernel


def channel_attention(x_nchw, w1, w2, *, tile_hw=None,
                      target_tile_bytes=4 << 20):
    """x_nchw: (B, C, H, W) f32.  w1: (Ch, C), w2: (C, Ch) — the [:, :, 0, 0]
    slices of the PyTorch Conv2d weights.  Returns (B, C, 1, 1)."""
    B, C, H, W = x_nchw.shape
    Ch = w1.shape[0]
    HW = H * W

    # Free, contiguous reshape (no transpose => no extra HBM pass).
    x = x_nchw.reshape(B, C, HW)
    w1t = jnp.transpose(w1)   # (C, Ch)
    w2t = jnp.transpose(w2)   # (Ch, C)

    # Batch tile: 8 rows when possible (dense sublane store, fewer grid steps),
    # otherwise the full batch (keeps the BlockSpec (8,128)-rule satisfied).
    Bt = 8 if (B % 8 == 0) else B

    # HW tile: largest multiple of 128 keeping one x buffer <= target bytes
    # (double-buffered input stays well under v5e 16 MiB / v7x 32 MiB scoped).
    if tile_hw is None:
        cols = (target_tile_bytes // (Bt * C * 4)) // 128 * 128
        cols = max(cols, 128)
        tHW = HW if HW <= cols else int(cols)
    else:
        tHW = int(tile_hw)
    assert tHW == HW or tHW % 128 == 0, "HW tile must be 128-aligned or full"
    n_hw = pl.cdiv(HW, tHW)
    needs_mask = (HW % tHW) != 0

    kernel = _make_kernel(HW, tHW, needs_mask)

    out = pl.pallas_call(
        kernel,
        out_shape=jax.ShapeDtypeStruct((B, C), jnp.float32),
        grid_spec=pltpu.PrefetchScalarGridSpec(
            num_scalar_prefetch=0,
            grid=(B // Bt, n_hw),                 # reduction (HW) axis last
            in_specs=[
                pl.BlockSpec((Bt, C, tHW), lambda b, h: (b, 0, h)),
                pl.BlockSpec((C, Ch), lambda b, h: (0, 0)),
                pl.BlockSpec((Ch, C), lambda b, h: (0, 0)),
            ],
            out_specs=pl.BlockSpec((Bt, C), lambda b, h: (b, 0)),
            scratch_shapes=[pltpu.VMEM((Bt, C), jnp.float32)],
        ),
        compiler_params=pltpu.CompilerParams(
            dimension_semantics=("parallel", "arbitrary"),
            vmem_limit_bytes=32 * 1024 * 1024,
        ),
    )(x, w1t, w2t)

    return out.reshape(B, C, 1, 1)


def _reference(x_nchw, w1, w2):
    # Pure-JAX reference of the (quirky-but-faithful) PyTorch forward.
    pooled = jnp.mean(x_nchw, axis=(2, 3))                 # (B, C)

    def mlp(v):
        h = jnp.maximum(v @ w1.T, 0.0)
        return h @ w2.T

    avgout = mlp(pooled)
    maxout = mlp(pooled)       # max_pool of a (B,C,1,1) tensor == identity
    return jax.nn.sigmoid(avgout + maxout).reshape(*pooled.shape, 1, 1)


if __name__ == "__main__":
    key = jax.random.PRNGKey(0)

    # --- Test 1: small canonical shapes (single HW tile, full-batch block) ---
    B, C, H, W = 2, 64, 16, 16
    Ch = C // 16
    kx, k1, k2, key = jax.random.split(key, 4)
    x = jax.random.normal(kx, (B, C, H, W), dtype=jnp.float32)
    w1 = jax.random.normal(k1, (Ch, C), dtype=jnp.float32) * 0.1
    w2 = jax.random.normal(k2, (C, Ch), dtype=jnp.float32) * 0.1

    out = jax.block_until_ready(channel_attention(x, w1, w2))
    ref = _reference(x, w1, w2)
    assert out.shape == (B, C, 1, 1), out.shape
    assert jnp.allclose(out, ref, atol=1e-5, rtol=1e-5), "test1 mismatch"

    # --- Test 2: multi-tile HW with a partial (masked) last tile, batch
    #     blocking (Bt=8) and a parallel batch-tile axis of size 2 ----------
    B2, C2, H2, W2 = 16, 32, 20, 20            # HW = 400, forced tile 128
    Ch2 = C2 // 8
    kx, k1, k2, key = jax.random.split(key, 4)
    x2 = jax.random.normal(kx, (B2, C2, H2, W2), dtype=jnp.float32)
    w1b = jax.random.normal(k1, (Ch2, C2), dtype=jnp.float32) * 0.1
    w2b = jax.random.normal(k2, (C2, Ch2), dtype=jnp.float32) * 0.1

    out2 = jax.block_until_ready(channel_attention(x2, w1b, w2b, tile_hw=128))
    ref2 = _reference(x2, w1b, w2b)
    assert out2.shape == (B2, C2, 1, 1), out2.shape
    assert jnp.allclose(out2, ref2, atol=1e-5, rtol=1e-5), "test2 mismatch"

    print("KERNEL_OK")
</pallas_src>

<mosaic_0001>
module attributes {stable_mosaic.version = 11 : i64} {
  func.func @kernel(%arg0: i32, %arg1: i32, %arg2: memref<2x64x256xf32, #tpu.memory_space<vmem>>, %arg3: memref<64x4xf32, #tpu.memory_space<vmem>>, %arg4: memref<4x64xf32, #tpu.memory_space<vmem>>, %arg5: memref<2x64xf32, #tpu.memory_space<vmem>>, %arg6: memref<2x64xf32, #tpu.memory_space<vmem>>) attributes {dimension_semantics = [#tpu.dimension_semantics<parallel>, #tpu.dimension_semantics<arbitrary>], iteration_bounds = array<i64: 1, 1>, scalar_prefetch = 0 : i64, scratch_operands = 1 : i64, tpu.core_type = #tpu.core_type<tc>, window_params = [{transform_indices = @transform_0, window_bounds = array<i64: 2, 64, 256>}, {pipeline_mode = #tpu.pipeline_mode<synchronous>, transform_indices = @transform_1, window_bounds = array<i64: 64, 4>}, {pipeline_mode = #tpu.pipeline_mode<synchronous>, transform_indices = @transform_2, window_bounds = array<i64: 4, 64>}, {transform_indices = @transform_3, window_bounds = array<i64: 2, 64>}]} {
    %c0_i32 = arith.constant 0 : i32
    %0 = arith.cmpi eq, %arg1, %c0_i32 : i32
    %1 = arith.extui %0 : i1 to i32
    %c0_i32_0 = arith.constant 0 : i32
    %2 = arith.cmpi ne, %1, %c0_i32_0 : i32
    scf.if %2 {
      %cst_9 = arith.constant 0.000000e+00 : f32
      %11 = vector.broadcast %cst_9 : f32 to vector<2x64xf32>
      %c0_10 = arith.constant 0 : index
      %c0_11 = arith.constant 0 : index
      %12 = vector.load %arg6[%c0_10, %c0_11] : memref<2x64xf32, #tpu.memory_space<vmem>>, vector<2x64xf32>
      tpu.vector_store %arg6[%c0_10, %c0_11], %11 {strides = array<i32>} : memref<2x64xf32, #tpu.memory_space<vmem>>, vector<2x64xf32>,
    } else {
    }
    %c0 = arith.constant 0 : index
    %c0_1 = arith.constant 0 : index
    %c0_2 = arith.constant 0 : index
    %3 = vector.load %arg2[%c0, %c0_1, %c0_2] : memref<2x64x256xf32, #tpu.memory_space<vmem>>, vector<2x64x256xf32>
    %c0_3 = arith.constant 0 : index
    %c0_4 = arith.constant 0 : index
    %4 = vector.load %arg6[%c0_3, %c0_4] : memref<2x64xf32, #tpu.memory_space<vmem>>, vector<2x64xf32>
    %cst = arith.constant dense<0.000000e+00> : vector<2x64xf32>
    %5 = vector.multi_reduction <add>, %3, %cst [2] : vector<2x64x256xf32> to vector<2x64xf32>
    %6 = arith.addf %4, %5 : vector<2x64xf32>
    %c0_5 = arith.constant 0 : index
    %c0_6 = arith.constant 0 : index
    %7 = vector.load %arg6[%c0_5, %c0_6] : memref<2x64xf32, #tpu.memory_space<vmem>>, vector<2x64xf32>
    tpu.vector_store %arg6[%c0_5, %c0_6], %6 {strides = array<i32>} : memref<2x64xf32, #tpu.memory_space<vmem>>, vector<2x64xf32>,
    %c0_i32_7 = arith.constant 0 : i32
    %8 = arith.cmpi eq, %arg1, %c0_i32_7 : i32
    %9 = arith.extui %8 : i1 to i32
    %c0_i32_8 = arith.constant 0 : i32
    %10 = arith.cmpi ne, %9, %c0_i32_8 : i32
    scf.if %10 {
      %c0_9 = arith.constant 0 : index
      %c0_10 = arith.constant 0 : index
      %11 = vector.load %arg6[%c0_9, %c0_10] : memref<2x64xf32, #tpu.memory_space<vmem>>, vector<2x64xf32>
      %cst_11 = arith.constant 3.906250e-03 : f32
      %12 = vector.broadcast %cst_11 : f32 to vector<2x64xf32>
      %13 = arith.mulf %11, %12 : vector<2x64xf32>
      %c0_12 = arith.constant 0 : index
      %c0_13 = arith.constant 0 : index
      %14 = vector.load %arg3[%c0_12, %c0_13] : memref<64x4xf32, #tpu.memory_space<vmem>>, vector<64x4xf32>
      %cst_14 = arith.constant dense<0.000000e+00> : vector<2x4xf32>
      %15 = tpu.matmul %13, %14, %cst_14 {dimension_numbers = #tpu.dot_dimension_numbers<[1], [0], [0], [1], [0, 0, 1, 1], [], []>} : vector<2x64xf32>, vector<64x4xf32>, vector<2x4xf32> -> vector<2x4xf32>
      %cst_15 = arith.constant 0.000000e+00 : f32
      %16 = vector.broadcast %cst_15 : f32 to vector<2x4xf32>
      %17 = arith.maximumf %15, %16 : vector<2x4xf32>
      %c0_16 = arith.constant 0 : index
      %c0_17 = arith.constant 0 : index
      %18 = vector.load %arg4[%c0_16, %c0_17] : memref<4x64xf32, #tpu.memory_space<vmem>>, vector<4x64xf32>
      %cst_18 = arith.constant dense<0.000000e+00> : vector<2x64xf32>
      %19 = tpu.matmul %17, %18, %cst_18 {dimension_numbers = #tpu.dot_dimension_numbers<[1], [0], [0], [1], [0, 0, 1, 1], [], []>} : vector<2x4xf32>, vector<4x64xf32>, vector<2x64xf32> -> vector<2x64xf32>
      %cst_19 = arith.constant 2.000000e+00 : f32
      %20 = vector.broadcast %cst_19 : f32 to vector<2x64xf32>
      %21 = arith.mulf %20, %19 : vector<2x64xf32>
      %22 = arith.negf %21 : vector<2x64xf32>
      %23 = math.exp %22 : vector<2x64xf32>
      %cst_20 = arith.constant 1.000000e+00 : f32
      %24 = vector.broadcast %cst_20 : f32 to vector<2x64xf32>
      %25 = arith.addf %24, %23 : vector<2x64xf32>
      %26 = arith.divf %24, %25 : vector<2x64xf32>
      %c0_21 = arith.constant 0 : index
      %c0_22 = arith.constant 0 : index
      %27 = vector.load %arg5[%c0_21, %c0_22] : memref<2x64xf32, #tpu.memory_space<vmem>>, vector<2x64xf32>
      tpu.vector_store %arg5[%c0_21, %c0_22], %26 {strides = array<i32>} : memref<2x64xf32, #tpu.memory_space<vmem>>, vector<2x64xf32>,
    } else {
    }
    return
  }
  func.func @transform_0(%arg0: i32, %arg1: i32) -> (i32, i32, i32) {
    %c0_i32 = arith.constant 0 : i32
    %c0_i32_0 = arith.constant 0 : i32
    return %arg0, %c0_i32, %arg1 : i32, i32, i32
  }
  func.func @transform_1(%arg0: i32, %arg1: i32) -> (i32, i32) {
    %c0_i32 = arith.constant 0 : i32
    %c0_i32_0 = arith.constant 0 : i32
    %c0_i32_1 = arith.constant 0 : i32
    return %c0_i32, %c0_i32_0 : i32, i32
  }
  func.func @transform_2(%arg0: i32, %arg1: i32) -> (i32, i32) {
    %c0_i32 = arith.constant 0 : i32
    %c0_i32_0 = arith.constant 0 : i32
    %c0_i32_1 = arith.constant 0 : i32
    return %c0_i32, %c0_i32_0 : i32, i32
  }
  func.func @transform_3(%arg0: i32, %arg1: i32) -> (i32, i32) {
    %c0_i32 = arith.constant 0 : i32
    %c0_i32_0 = arith.constant 0 : i32
    return %arg0, %c0_i32 : i32, i32
  }
}

</mosaic_0001>

<llo_original>
// kernel: tpu_custom_call.1
$region0: #{tpu_custom_call.1}
  #allocation0 [shape = 'u32[]', space=smem, size = 0x4, offset = 0x4, fixed_abs, tag = 'smem constant byte address 0x4 - core index']
  #allocation1 [shape = 'u32[144,128]{1,0:T(1,128)}', space=vmem, size = 0x12000, scoped, tag = 'internal scratch']
  #allocation2 [shape = 'f32[2,64]{1,0:T(2,128)}', space=vmem, size = 0x400, scoped, tag = 'scratch operand']
  %s0 = inlined_call_operand.hbm [shape: f32[2,64,256], index: 0, kind: input, shape index: {}]
  %s1 = inlined_call_operand.vmem [shape: f32[64,4], index: 1, kind: input, shape index: {}]
  %s2 = inlined_call_operand.vmem [shape: f32[4,64], index: 2, kind: input, shape index: {}]
  %s3 = inlined_call_operand.hbm [shape: f32[2,64], index: 3, kind: output, shape index: {}]
  %s4 = sld [smem:[#allocation0]]
  $region34: #{tpu_custom_call.1} parent=0
    _
  %s6 = ssub.s32 1, %s4
  %s7 = scalar_select 0, %s6, %s4
  $region1: #{tpu_custom_call.1} parent=0
    #allocation3 [shape = 'u8[131072]{0}', space=vmem, size = 0x20000, scoped, tag = 'input window, operand 0, single buffered']
    #allocation4 [shape = 's32[1]{0}', space=sflag, size = 0x4, scoped, tag = 'scoped memory for tpu_custom_call.1']
    #allocation5 [shape = 's32[1]{0}', space=sflag, size = 0x4, scoped, tag = 'scoped memory for tpu_custom_call.1']
    #allocation6 [shape = 'u8[1024]{0}', space=vmem, size = 0x400, scoped, tag = 'output window, operand 0, single buffered']
    %8 = vsyncpa [#allocation4], 0
    %9 = vsyncpa [#allocation5], 0
    // Predicated region
    $region2: #{tpu_custom_call.1} parent=1 // pred_check
      _
    $region3: #{tpu_custom_call.1} parent=1 // pred_check_branch
      %11 = sbr.rel (0) target = $region5
    $region4: #{tpu_custom_call.1} parent=1 // pred_region
      %s13 = ssub.s32 4096, 4096
      %14 = vsyncadd [#allocation4], %s13
      %s15 = sshll.u32 [#allocation3], 4
      %s16 = int_to_ptr.vmem [resolvable:$true] %s15
      %21 = dma.hbm_to_vmem [thread:$0]  %s0, 4096, %s16, [#allocation4], 256, 256, 16
    $region5: #{tpu_custom_call.1} parent=1 // pred_fallthru
      _
    // Predicated region
    $region6: #{tpu_custom_call.1} parent=1 // pred_check
      _
    $region7: #{tpu_custom_call.1} parent=1 // pred_check_branch
      %23 = sbr.rel (0) target = $region9
    $region8: #{tpu_custom_call.1} parent=1 // pred_region
      _
    $region9: #{tpu_custom_call.1} parent=1 // pred_fallthru
      _
    // Predicated region
    $region10: #{tpu_custom_call.1} parent=1 // pred_check
      _
    $region11: #{tpu_custom_call.1} parent=1 // pred_check_branch
      %25 = sbr.rel (0) target = $region13
    $region12: #{tpu_custom_call.1} parent=1 // pred_region
      _
    $region13: #{tpu_custom_call.1} parent=1 // pred_fallthru
      _
    // Predicated region
    $region14: #{tpu_custom_call.1} parent=1 // pred_check
      _
    $region15: #{tpu_custom_call.1} parent=1 // pred_check_branch
      %27 = sbr.rel (0) target = $region17
    $region16: #{tpu_custom_call.1} parent=1 // pred_region
      %28 = dma.done [#allocation4], 4096
    $region17: #{tpu_custom_call.1} parent=1 // pred_fallthru
      _
    %p29 = scmp.eq.s32.totalorder 0, 0
    // Predicated region
    $region18: #{tpu_custom_call.1} parent=1 // pred_check
      %p30 = pneg %p29
    $region19: #{tpu_custom_call.1} parent=1 // pred_check_branch
      %32 = sbr.rel (%p30) target = $region21
    $region20: #{tpu_custom_call.1} parent=1 // pred_region
      %vm33 = vcmask 517120
      %34 = vst.msk [vmem:[#allocation2] sm:$0x3] %vm33, 0.0
    $region21: #{tpu_custom_call.1} parent=1 // pred_fallthru
      _
    %v35 = vld [vmem:[#allocation3] sm:$0xff]
    %v36 = vld [vmem:[#allocation3 + $0x8] sm:$0xff]
    %v37 = vld [vmem:[#allocation3 + $0x10] sm:$0xff]
    %v38 = vld [vmem:[#allocation3 + $0x18] sm:$0xff]
    %v39 = vld [vmem:[#allocation3 + $0x20] sm:$0xff]
    %v40 = vld [vmem:[#allocation3 + $0x28] sm:$0xff]
    %v41 = vld [vmem:[#allocation3 + $0x30] sm:$0xff]
    %v42 = vld [vmem:[#allocation3 + $0x38] sm:$0xff]
    %v43 = vld [vmem:[#allocation3 + $0x40] sm:$0xff]
    %v44 = vld [vmem:[#allocation3 + $0x48] sm:$0xff]
    %v45 = vld [vmem:[#allocation3 + $0x50] sm:$0xff]
    %v46 = vld [vmem:[#allocation3 + $0x58] sm:$0xff]
    %v47 = vld [vmem:[#allocation3 + $0x60] sm:$0xff]
    %v48 = vld [vmem:[#allocation3 + $0x68] sm:$0xff]
    %v49 = vld [vmem:[#allocation3 + $0x70] sm:$0xff]
    %v50 = vld [vmem:[#allocation3 + $0x78] sm:$0xff]
    %v51 = vld [vmem:[#allocation3 + $0x80] sm:$0xff]
    %v52 = vld [vmem:[#allocation3 + $0x88] sm:$0xff]
    %v53 = vld [vmem:[#allocation3 + $0x90] sm:$0xff]
    %v54 = vld [vmem:[#allocation3 + $0x98] sm:$0xff]
    %v55 = vld [vmem:[#allocation3 + $0xa0] sm:$0xff]
    %v56 = vld [vmem:[#allocation3 + $0xa8] sm:$0xff]
    %v57 = vld [vmem:[#allocation3 + $0xb0] sm:$0xff]
    %v58 = vld [vmem:[#allocation3 + $0xb8] sm:$0xff]
    %v59 = vld [vmem:[#allocation3 + $0xc0] sm:$0xff]
    %v60 = vld [vmem:[#allocation3 + $0xc8] sm:$0xff]
    %v61 = vld [vmem:[#allocation3 + $0xd0] sm:$0xff]
    %v62 = vld [vmem:[#allocation3 + $0xd8] sm:$0xff]
    %v63 = vld [vmem:[#allocation3 + $0xe0] sm:$0xff]
    %v64 = vld [vmem:[#allocation3 + $0xe8] sm:$0xff]
    %v65 = vld [vmem:[#allocation3 + $0xf0] sm:$0xff]
    %v66 = vld [vmem:[#allocation3 + $0xf8] sm:$0xff]
    %v67 = vld [vmem:[#allocation2] sm:$0x3]
    %v68 = vadd.f32 %v35, %v36
    %69 = vadd.xlane.f32.xlu0 %v68
    %v70 = vpop.xlane.xlu0 %69
    %v71 = vadd.f32 %v37, %v38
    %72 = vadd.xlane.f32.xlu0 %v71
    %v73 = vpop.xlane.xlu0 %72
    %v74 = vadd.f32 %v39, %v40
    %75 = vadd.xlane.f32.xlu0 %v74
    %v76 = vpop.xlane.xlu0 %75
    %v77 = vadd.f32 %v41, %v42
    %78 = vadd.xlane.f32.xlu0 %v77
    %v79 = vpop.xlane.xlu0 %78
    %v80 = vadd.f32 %v43, %v44
    %81 = vadd.xlane.f32.xlu0 %v80
    %v82 = vpop.xlane.xlu0 %81
    %v83 = vadd.f32 %v45, %v46
    %84 = vadd.xlane.f32.xlu0 %v83
    %v85 = vpop.xlane.xlu0 %84
    %v86 = vadd.f32 %v47, %v48
    %87 = vadd.xlane.f32.xlu0 %v86
    %v88 = vpop.xlane.xlu0 %87
    %v89 = vadd.f32 %v49, %v50
    %90 = vadd.xlane.f32.xlu0 %v89
    %v91 = vpop.xlane.xlu0 %90
    %v92 = vadd.f32 %v51, %v52
    %93 = vadd.xlane.f32.xlu0 %v92
    %v94 = vpop.xlane.xlu0 %93
    %v95 = vadd.f32 %v53, %v54
    %96 = vadd.xlane.f32.xlu0 %v95
    %v97 = vpop.xlane.xlu0 %96
    %v98 = vadd.f32 %v55, %v56
    %99 = vadd.xlane.f32.xlu0 %v98
    %v100 = vpop.xlane.xlu0 %99
    %v101 = vadd.f32 %v57, %v58
    %102 = vadd.xlane.f32.xlu0 %v101
    %v103 = vpop.xlane.xlu0 %102
    %v104 = vadd.f32 %v59, %v60
    %105 = vadd.xlane.f32.xlu0 %v104
    %v106 = vpop.xlane.xlu0 %105
    %v107 = vadd.f32 %v61, %v62
    %108 = vadd.xlane.f32.xlu0 %v107
    %v109 = vpop.xlane.xlu0 %108
    %v110 = vadd.f32 %v63, %v64
    %111 = vadd.xlane.f32.xlu0 %v110
    %v112 = vpop.xlane.xlu0 %111
    %v113 = vadd.f32 %v65, %v66
    %114 = vadd.xlane.f32.xlu0 %v113
    %v115 = vpop.xlane.xlu0 %114
    %v132 = vlaneseq
    %v133 = vand.u32 %v132, 127
    %v134 = vlaneseq
    %v135 = vshrl.u32 %v134, 7
    %v136 = vsub.s32 %v133, %v135
    %v137 = vrot.slane %v70, %v136
    %v138 = vadd.s32 %v133, 4294967288
    %v139 = vlaneseq
    %v140 = vshrl.u32 %v139, 7
    %v141 = vsub.s32 %v138, %v140
    %v142 = vrot.slane %v73, %v141
    %vm143 = vcmask 130112
    %v144 = vsel %vm143, %v142, %v137
    %v145 = vadd.s32 %v133, 4294967280
    %v146 = vlaneseq
    %v147 = vshrl.u32 %v146, 7
    %v148 = vsub.s32 %v145, %v147
    %v149 = vrot.slane %v76, %v148
    %vm150 = vcmask 195712
    %v151 = vsel %vm150, %v149, %v144
    %v152 = vadd.s32 %v133, 4294967272
    %v153 = vlaneseq
    %v154 = vshrl.u32 %v153, 7
    %v155 = vsub.s32 %v152, %v154
    %v156 = vrot.slane %v79, %v155
    %vm157 = vcmask 261312
    %v158 = vsel %vm157, %v156, %v151
    %v159 = vadd.s32 %v133, 4294967264
    %v160 = vlaneseq
    %v161 = vshrl.u32 %v160, 7
    %v162 = vsub.s32 %v159, %v161
    %v163 = vrot.slane %v82, %v162
    %vm164 = vcmask 326912
    %v165 = vsel %vm164, %v163, %v158
    %v166 = vadd.s32 %v133, 4294967256
    %v167 = vlaneseq
    %v168 = vshrl.u32 %v167, 7
    %v169 = vsub.s32 %v166, %v168
    %v170 = vrot.slane %v85, %v169
    %vm171 = vcmask 392512
    %v172 = vsel %vm171, %v170, %v165
    %v173 = vadd.s32 %v133, 4294967248
    %v174 = vlaneseq
    %v175 = vshrl.u32 %v174, 7
    %v176 = vsub.s32 %v173, %v175
    %v177 = vrot.slane %v88, %v176
    %vm178 = vcmask 458112
    %v179 = vsel %vm178, %v177, %v172
    %v180 = vadd.s32 %v133, 4294967240
    %v181 = vlaneseq
    %v182 = vshrl.u32 %v181, 7
    %v183 = vsub.s32 %v180, %v182
    %v184 = vrot.slane %v91, %v183
    %vm185 = vcmask 523712
    %v186 = vsel %vm185, %v184, %v179
    %v187 = vlaneseq
    %v188 = vshrl.u32 %v187, 7
    %v189 = vsub.s32 %v133, %v188
    %v190 = vrot.slane %v94, %v189
    %v191 = vlaneseq
    %v192 = vshrl.u32 %v191, 7
    %v193 = vsub.s32 %v138, %v192
    %v194 = vrot.slane %v97, %v193
    %v195 = vsel %vm143, %v194, %v190
    %v196 = vlaneseq
    %v197 = vshrl.u32 %v196, 7
    %v198 = vsub.s32 %v145, %v197
    %v199 = vrot.slane %v100, %v198
    %v200 = vsel %vm150, %v199, %v195
    %v201 = vlaneseq
    %v202 = vshrl.u32 %v201, 7
    %v203 = vsub.s32 %v152, %v202
    %v204 = vrot.slane %v103, %v203
    %v205 = vsel %vm157, %v204, %v200
    %v206 = vlaneseq
    %v207 = vshrl.u32 %v206, 7
    %v208 = vsub.s32 %v159, %v207
    %v209 = vrot.slane %v106, %v208
    %v210 = vsel %vm164, %v209, %v205
    %v211 = vlaneseq
    %v212 = vshrl.u32 %v211, 7
    %v213 = vsub.s32 %v166, %v212
    %v214 = vrot.slane %v109, %v213
    %v215 = vsel %vm171, %v214, %v210
    %v216 = vlaneseq
    %v217 = vshrl.u32 %v216, 7
    %v218 = vsub.s32 %v173, %v217
    %v219 = vrot.slane %v112, %v218
    %v220 = vsel %vm178, %v219, %v215
    %v221 = vlaneseq
    %v222 = vshrl.u32 %v221, 7
    %v223 = vsub.s32 %v180, %v222
    %v224 = vrot.slane %v115, %v223
    %v225 = vsel %vm185, %v224, %v220
    %vm226 = vcmask 1041409
    %v227 = vsel %vm226, %v225, %v186
    %v229 = vadd.f32 %v67, %v227
    %vm230 = vcmask 517120
    %231 = vst.msk [vmem:[#allocation2] sm:$0x3] %vm230, %v229
    // Predicated region
    $region22: #{tpu_custom_call.1} parent=1 // pred_check
      %p232 = pneg %p29
    $region23: #{tpu_custom_call.1} parent=1 // pred_check_branch
      %234 = sbr.rel (%p232) target = $region25
    $region24: #{tpu_custom_call.1} parent=1 // pred_region
      %v235 = vld [vmem:[#allocation2] sm:$0x3]
      %v236 = vmul.f32 %v235, 0.00390625
      %v237 = vld [vmem:[%s1] sm:$0xff]
      %v238 = vld [vmem:[%s1 + $0x8] sm:$0xff]
      %v239 = vld [vmem:[%s1 + $0x10] sm:$0xff]
      %v240 = vld [vmem:[%s1 + $0x18] sm:$0xff]
      %v241 = vld [vmem:[%s1 + $0x20] sm:$0xff]
      %v242 = vld [vmem:[%s1 + $0x28] sm:$0xff]
      %v243 = vld [vmem:[%s1 + $0x30] sm:$0xff]
      %v244 = vld [vmem:[%s1 + $0x38] sm:$0xff]
      %vm245 = vcmask 523264
      %v247 = vsel %vm245, %v236, 0
      %249 = vmatprep.subr.mxu0 0.0
      %250 = vmatpush1.msra.mxu0 0.0
      %251 = vmatprep.subr.mxu0 0.0
      %252 = vmatpush1.msra.mxu0 0.0
      %253 = vmatprep.subr.mxu0 0.0
      %254 = vmatpush1.msra.mxu0 0.0
      %255 = vmatprep.subr.mxu0 0.0
      %256 = vmatpush1.msra.mxu0 0.0
      %257 = vmatprep.subr.mxu0 0.0
      %258 = vmatpush1.msra.mxu0 0.0
      %259 = vmatprep.subr.mxu0 0.0
      %260 = vmatpush1.msra.mxu0 0.0
      %261 = vmatprep.subr.mxu0 0.0
      %262 = vmatpush1.msra.mxu0 0.0
      %263 = vmatprep.subr.mxu0 0.0
      %264 = vmatpush1.msra.mxu0 0.0
      %265 = vmatprep.subr.mxu0 0.0
      %266 = vmatpush1.msra.mxu0 %v244
      %267 = vmatprep.subr.mxu0 0.0
      %268 = vmatpush1.msra.mxu0 %v243
      %269 = vmatprep.subr.mxu0 0.0
      %270 = vmatpush1.msra.mxu0 %v242
      %271 = vmatprep.subr.mxu0 0.0
      %272 = vmatpush1.msra.mxu0 %v241
      %273 = vmatprep.subr.mxu0 0.0
      %274 = vmatpush1.msra.mxu0 %v240
      %275 = vmatprep.subr.mxu0 0.0
      %276 = vmatpush1.msra.mxu0 %v239
      %277 = vmatprep.subr.mxu0 0.0
      %278 = vmatpush1.msra.mxu0 %v238
      %279 = vmatprep.subr.mxu0 0.0
      %280 = vmatpush1.msra.mxu0 %v237
      %281 = vmatprep.subr.mxu0 0.0
      %282 = vmatpush2.msra.mxu0 0.0
      %283 = vmatprep.subr.mxu0 0.0
      %284 = vmatpush2.msra.mxu0 0.0
      %285 = vmatprep.subr.mxu0 0.0
      %286 = vmatpush2.msra.mxu0 0.0
      %287 = vmatprep.subr.mxu0 0.0
      %288 = vmatpush2.msra.mxu0 0.0
      %289 = vmatprep.subr.mxu0 0.0
      %290 = vmatpush2.msra.mxu0 0.0
      %291 = vmatprep.subr.mxu0 0.0
      %292 = vmatpush2.msra.mxu0 0.0
      %293 = vmatprep.subr.mxu0 0.0
      %294 = vmatpush2.msra.mxu0 0.0
      %295 = vmatprep.subr.mxu0 0.0
      %296 = vmatpush2.msra.mxu0 0.0
      %297 = vmatprep.subr.mxu0 0.0
      %298 = vmatpush2.msra.mxu0 0.0
      %299 = vmatprep.subr.mxu0 0.0
      %300 = vmatpush2.msra.mxu0 0.0
      %301 = vmatprep.subr.mxu0 0.0
      %302 = vmatpush2.msra.mxu0 0.0
      %303 = vmatprep.subr.mxu0 0.0
      %304 = vmatpush2.msra.mxu0 0.0
      %305 = vmatprep.subr.mxu0 0.0
      %306 = vmatpush2.msra.mxu0 0.0
      %307 = vmatprep.subr.mxu0 0.0
      %308 = vmatpush2.msra.mxu0 0.0
      %309 = vmatprep.subr.mxu0 0.0
      %310 = vmatpush2.msra.mxu0 0.0
      %311 = vmatprep.subr.mxu0 0.0
      %312 = vmatpush2.msra.mxu0 0.0
      %313 = vmatprep.mubr.f32.mxu0 0.0
      %314 = vmatmul.mubr.f32.gmra.mxu0 %v247
      %v315 = vpop.f32.mrf.mxu0
      %v316 = vadd.f32 0.0, %v315
      %v317 = vpop.f32.mrf.mxu0
      %318 = vdwg.mxu0
      %v319 = vmax.f32 %v316, 0.0
      %v320 = vld [vmem:[%s2] sm:$0xf]
      %vm321 = vcmask 31744
      %v323 = vsel %vm321, %v319, 0
      %vm325 = vcmask 1043456
      %v327 = vsel %vm325, %v320, 0
      %329 = vmatprep.subr.mxu0 0.0
      %330 = vmatpush1.msra.mxu0 0.0
      %331 = vmatprep.subr.mxu0 0.0
      %332 = vmatpush1.msra.mxu0 0.0
      %333 = vmatprep.subr.mxu0 0.0
      %334 = vmatpush1.msra.mxu0 0.0
      %335 = vmatprep.subr.mxu0 0.0
      %336 = vmatpush1.msra.mxu0 0.0
      %337 = vmatprep.subr.mxu0 0.0
      %338 = vmatpush1.msra.mxu0 0.0
      %339 = vmatprep.subr.mxu0 0.0
      %340 = vmatpush1.msra.mxu0 0.0
      %341 = vmatprep.subr.mxu0 0.0
      %342 = vmatpush1.msra.mxu0 0.0
      %343 = vmatprep.subr.mxu0 0.0
      %344 = vmatpush1.msra.mxu0 0.0
      %345 = vmatprep.subr.mxu0 0.0
      %346 = vmatpush1.msra.mxu0 0.0
      %347 = vmatprep.subr.mxu0 0.0
      %348 = vmatpush1.msra.mxu0 0.0
      %349 = vmatprep.subr.mxu0 0.0
      %350 = vmatpush1.msra.mxu0 0.0
      %351 = vmatprep.subr.mxu0 0.0
      %352 = vmatpush1.msra.mxu0 0.0
      %353 = vmatprep.subr.mxu0 0.0
      %354 = vmatpush1.msra.mxu0 0.0
      %355 = vmatprep.subr.mxu0 0.0
      %356 = vmatpush1.msra.mxu0 0.0
      %357 = vmatprep.subr.mxu0 0.0
      %358 = vmatpush1.msra.mxu0 0.0
      %359 = vmatprep.subr.mxu0 0.0
      %360 = vmatpush1.msra.mxu0 %v327
      %361 = vmatprep.subr.mxu0 0.0
      %362 = vmatpush2.msra.mxu0 0.0
      %363 = vmatprep.subr.mxu0 0.0
      %364 = vmatpush2.msra.mxu0 0.0
      %365 = vmatprep.subr.mxu0 0.0
      %366 = vmatpush2.msra.mxu0 0.0
      %367 = vmatprep.subr.mxu0 0.0
      %368 = vmatpush2.msra.mxu0 0.0
      %369 = vmatprep.subr.mxu0 0.0
      %370 = vmatpush2.msra.mxu0 0.0
      %371 = vmatprep.subr.mxu0 0.0
      %372 = vmatpush2.msra.mxu0 0.0
      %373 = vmatprep.subr.mxu0 0.0
      %374 = vmatpush2.msra.mxu0 0.0
      %375 = vmatprep.subr.mxu0 0.0
      %376 = vmatpush2.msra.mxu0 0.0
      %377 = vmatprep.subr.mxu0 0.0
      %378 = vmatpush2.msra.mxu0 0.0
      %379 = vmatprep.subr.mxu0 0.0
      %380 = vmatpush2.msra.mxu0 0.0
      %381 = vmatprep.subr.mxu0 0.0
      %382 = vmatpush2.msra.mxu0 0.0
      %383 = vmatprep.subr.mxu0 0.0
      %384 = vmatpush2.msra.mxu0 0.0
      %385 = vmatprep.subr.mxu0 0.0
      %386 = vmatpush2.msra.mxu0 0.0
      %387 = vmatprep.subr.mxu0 0.0
      %388 = vmatpush2.msra.mxu0 0.0
      %389 = vmatprep.subr.mxu0 0.0
      %390 = vmatpush2.msra.mxu0 0.0
      %391 = vmatprep.subr.mxu0 0.0
      %392 = vmatpush2.msra.mxu0 0.0
      %393 = vmatprep.mubr.f32.mxu0 0.0
      %394 = vmatmul.mubr.f32.gmra.mxu0 %v323
      %v395 = vpop.f32.mrf.mxu0
      %v396 = vadd.f32 0.0, %v395
      %v397 = vpop.f32.mrf.mxu0
      %398 = vdwg.mxu0
      %v399 = vmul.f32 %v396, 2.0
      %v400 = vxor.u32 %v399, 2147483648
      %v401 = vmul.f32 %v400, 1.442695
      %v402 = vpow.pop %v401
      %v403 = vadd.f32 %v402, 1.0
      %v404 = vrcp.pop %v403
      %v405 = vmul.f32 1.0, %v404
      %406 = vst.msk [vmem:[#allocation6] sm:$0x3] %vm230, %v405
    $region25: #{tpu_custom_call.1} parent=1 // pred_fallthru
      _
    // Predicated region
    $region26: #{tpu_custom_call.1} parent=1 // pred_check
      _
    $region27: #{tpu_custom_call.1} parent=1 // pred_check_branch
      %408 = sbr.rel (0) target = $region29
    $region28: #{tpu_custom_call.1} parent=1 // pred_region
      %s410 = ssub.s32 32, 32
      %411 = vsyncadd [#allocation5], %s410
      %s413 = sshll.u32 [#allocation6], 4
      %s414 = int_to_ptr.vmem [resolvable:$true] %s413
      %416 = dma.vmem_to_hbm [thread:$0]  %s414, 32, %s3, [#allocation5]
    $region29: #{tpu_custom_call.1} parent=1 // pred_fallthru
      _
    // Predicated region
    $region30: #{tpu_custom_call.1} parent=1 // pred_check
      _
    $region31: #{tpu_custom_call.1} parent=1 // pred_check_branch
      %418 = sbr.rel (0) target = $region33
    $region32: #{tpu_custom_call.1} parent=1 // pred_region
      %419 = dma.done [#allocation5], 32
    $region33: #{tpu_custom_call.1} parent=1 // pred_fallthru
      _
    %420 = vsyncpa [#allocation4], 1
    %421 = vsyncpa [#allocation5], 1

</llo_original>
